<compile_context>
chip_gen: v7x
topology: tpu7x:2x2x1
jax: 0.10.0
libtpu: 0.0.40
codegen_flags: <defaults>
</compile_context>

<pallas_src>
import jax
import jax.numpy as jnp
from jax.experimental import pallas as pl
from jax.experimental.pallas import tpu as pltpu


# ------------------------------ helpers --------------------------------------

def _round_up(x, m):
    return (x + m - 1) // m * m


def _vmem_budget_bytes():
    try:
        cap = int(pltpu.get_tpu_info().vmem_capacity_bytes)
    except Exception:
        cap = 64 * 1024 * 1024
    # leave room for resident weights, double-buffered outputs, compiler scratch
    return cap // 4


def _choose_tile_m(m, row_bytes=0):
    """Largest M-tile (multiple of 8, <= 512) dividing round_up(m, 8) whose
    double-buffered per-row traffic fits the VMEM budget (v7x-aware)."""
    m8 = _round_up(max(m, 8), 8)
    budget = _vmem_budget_bytes()
    for cand in (512, 384, 256, 192, 128, 96, 64, 32, 16, 8):
        if cand > m8 or m8 % cand:
            continue
        if row_bytes and 2 * cand * row_bytes > budget:
            continue
        return cand
    return 8


def _compiler_params(dimension_semantics):
    kwargs = dict(dimension_semantics=dimension_semantics)
    try:
        cap = int(pltpu.get_tpu_info().vmem_capacity_bytes)
        kwargs["vmem_limit_bytes"] = cap * 3 // 4
    except Exception:
        pass
    return pltpu.CompilerParams(**kwargs)


# --------------------- Pass A: fused conv1 + projection ----------------------

def _conv1_proj_kernel(a_ref, w1_ref, wp_ref, c1_ref, pr_ref, s_ref, sq_ref):
    """One M-tile: the im2col tile is DMA'd once and hit with both weight
    matrices; per-channel sum / sum^2 of the conv1 columns (BN1 batch stats)
    are written as per-tile partials (grid stays parallel-safe)."""
    a = a_ref[...]
    y1 = jnp.dot(a, w1_ref[...], preferred_element_type=jnp.float32)
    yp = jnp.dot(a, wp_ref[...], preferred_element_type=jnp.float32)
    c1_ref[...] = y1.astype(c1_ref.dtype)
    pr_ref[...] = yp.astype(pr_ref.dtype)
    s_ref[...] = jnp.sum(y1, axis=0, keepdims=True)
    sq_ref[...] = jnp.sum(y1 * y1, axis=0, keepdims=True)


def conv1_proj_matmul(a, w1, wp):
    """(M, K) @ (K, C) twice (shared A read) with fused BN1 partial stats.

    Returns (c1 (Mp, C) bf16, proj (Mp, C) bf16, sum (C,) f32, sumsq (C,) f32).
    Padded rows (if any) are all-zero and bias-free, so they do not perturb
    the statistics."""
    m, k = a.shape
    c = w1.shape[1]
    row_bytes = 2 * (k + 2 * c)              # bf16 A row + two bf16 output rows
    tile_m = _choose_tile_m(m, row_bytes)
    mp = _round_up(m, tile_m)
    if mp != m:
        a = jnp.pad(a, ((0, mp - m), (0, 0)))
    grid = mp // tile_m

    cost = pl.CostEstimate(
        flops=2 * 2 * mp * k * c,
        transcendentals=0,
        bytes_accessed=2 * (mp * k + 2 * k * c + 2 * mp * c) + 2 * 4 * grid * c)

    c1, pr, s, sq = pl.pallas_call(
        _conv1_proj_kernel,
        out_shape=(jax.ShapeDtypeStruct((mp, c), jnp.bfloat16),
                   jax.ShapeDtypeStruct((mp, c), jnp.bfloat16),
                   jax.ShapeDtypeStruct((grid, 1, c), jnp.float32),
                   jax.ShapeDtypeStruct((grid, 1, c), jnp.float32)),
        grid=(grid,),
        in_specs=[pl.BlockSpec((tile_m, k), lambda i: (i, 0)),
                  # TODO(synk): pipeline_mode=pl.Buffered(1) on these two
                  # constant-index weight blocks would drop their duplicate
                  # VMEM buffer on v7x.
                  pl.BlockSpec((k, c), lambda i: (0, 0)),
                  pl.BlockSpec((k, c), lambda i: (0, 0))],
        out_specs=(pl.BlockSpec((tile_m, c), lambda i: (i, 0)),
                   pl.BlockSpec((tile_m, c), lambda i: (i, 0)),
                   pl.BlockSpec((None, 1, c), lambda i: (i, 0, 0)),
                   pl.BlockSpec((None, 1, c), lambda i: (i, 0, 0))),
        compiler_params=_compiler_params(("parallel",)),
        cost_estimate=cost,
    )(a, w1, wp)
    return c1, pr, jnp.sum(s, axis=(0, 1)), jnp.sum(sq, axis=(0, 1))


# ------------------------- Pass B: BN1 affine + ReLU --------------------------

def _bn_relu_kernel(x_ref, scale_ref, shift_ref, o_ref):
    x = x_ref[...].astype(jnp.float32)
    o_ref[...] = jnp.maximum(x * scale_ref[...] + shift_ref[...],
                             0.0).astype(o_ref.dtype)


def bn_relu(x, scale, shift):
    m, c = x.shape
    tile_m = _choose_tile_m(m, 4 * c)
    assert m % tile_m == 0
    return pl.pallas_call(
        _bn_relu_kernel,
        out_shape=jax.ShapeDtypeStruct((m, c), jnp.bfloat16),
        grid=(m // tile_m,),
        in_specs=[pl.BlockSpec((tile_m, c), lambda i: (i, 0)),
                  pl.BlockSpec((1, c), lambda i: (0, 0)),
                  pl.BlockSpec((1, c), lambda i: (0, 0))],
        out_specs=pl.BlockSpec((tile_m, c), lambda i: (i, 0)),
        compiler_params=_compiler_params(("parallel",)),
    )(x, scale, shift)


# ----------------- Pass C: conv2 (3x3, stride 1) row kernel -------------------

def _conv2_row_kernel(top_ref, mid_ref, bot_ref, w2_ref, o_ref, s_ref, sq_ref):
    """One output row: the y / y+1 / y+2 rows of the zero-padded h1 image
    arrive via three single-row BlockSpecs; the 3 column shifts are static
    in-VMEM slices; 9 (Wo, C) @ (C, C) matmuls accumulate in f32.  BN2 partial
    stats ride in the epilogue."""
    wo, c = o_ref.shape
    rows = (top_ref, mid_ref, bot_ref)
    acc = jnp.zeros((wo, c), jnp.float32)
    for kh in range(3):
        for kw in range(3):
            a = rows[kh][kw:kw + wo, :]                                  # (Wo, C)
            wblk = w2_ref[(kh * 3 + kw) * c:(kh * 3 + kw + 1) * c, :]    # (C, C)
            acc = acc + jnp.dot(a, wblk, preferred_element_type=jnp.float32)
    o_ref[...] = acc.astype(o_ref.dtype)
    s_ref[...] = jnp.sum(acc, axis=0, keepdims=True)
    sq_ref[...] = jnp.sum(acc * acc, axis=0, keepdims=True)


def conv2_3x3(h1p, w2):
    """3x3 / stride 1 / pad 1 conv over the (already zero-padded) h1 image,
    with fused BN2 partial stats.  No im2col slab is materialized in HBM."""
    n, hp2, wp2, c = h1p.shape
    ho, wo = hp2 - 2, wp2 - 2

    def row_spec(off):
        return pl.BlockSpec((None, None, wp2, c),
                            lambda b, y, o=off: (b, y + o, 0, 0))

    cost = pl.CostEstimate(
        flops=2 * 9 * n * ho * wo * c * c,
        transcendentals=0,
        bytes_accessed=(2 * (3 * n * ho * wp2 * c + 9 * c * c + n * ho * wo * c)
                        + 2 * 4 * n * ho * c))

    # TODO(synk): fold BN1+ReLU (with border re-zeroing) into this kernel so
    # h1 never round-trips HBM, and band multiple output rows per grid step.
    c2, s, sq = pl.pallas_call(
        _conv2_row_kernel,
        out_shape=(jax.ShapeDtypeStruct((n, ho, wo, c), jnp.bfloat16),
                   jax.ShapeDtypeStruct((n, ho, 1, c), jnp.float32),
                   jax.ShapeDtypeStruct((n, ho, 1, c), jnp.float32)),
        grid=(n, ho),
        in_specs=[row_spec(0), row_spec(1), row_spec(2),
                  pl.BlockSpec((9 * c, c), lambda b, y: (0, 0))],
        out_specs=(pl.BlockSpec((None, None, wo, c), lambda b, y: (b, y, 0, 0)),
                   pl.BlockSpec((None, None, 1, c), lambda b, y: (b, y, 0, 0)),
                   pl.BlockSpec((None, None, 1, c), lambda b, y: (b, y, 0, 0))),
        compiler_params=_compiler_params(("parallel", "parallel")),
        cost_estimate=cost,
    )(h1p, h1p, h1p, w2)
    return c2, jnp.sum(s, axis=(0, 1, 2)), jnp.sum(sq, axis=(0, 1, 2))


# --------------- Pass D: BN2 affine + residual add + ReLU ---------------------

def _bn_add_relu_kernel(x_ref, r_ref, scale_ref, shift_ref, o_ref):
    y = (x_ref[...].astype(jnp.float32) * scale_ref[...] + shift_ref[...]
         + r_ref[...].astype(jnp.float32))
    o_ref[...] = jnp.maximum(y, 0.0)


def bn_add_relu(x, res, scale, shift):
    m, c = x.shape
    tile_m = _choose_tile_m(m, 8 * c)
    assert m % tile_m == 0
    return pl.pallas_call(
        _bn_add_relu_kernel,
        out_shape=jax.ShapeDtypeStruct((m, c), jnp.float32),
        grid=(m // tile_m,),
        in_specs=[pl.BlockSpec((tile_m, c), lambda i: (i, 0)),
                  pl.BlockSpec((tile_m, c), lambda i: (i, 0)),
                  pl.BlockSpec((1, c), lambda i: (0, 0)),
                  pl.BlockSpec((1, c), lambda i: (0, 0))],
        out_specs=pl.BlockSpec((tile_m, c), lambda i: (i, 0)),
        compiler_params=_compiler_params(("parallel",)),
    )(x, res, scale, shift)


# ------------------------------ glue (JAX) ------------------------------------

def im2col(x_nhwc, stride):
    """3x3 conv patches, padding=1.  Returns ((N*Ho*Wo, 9*C), (N, Ho, Wo))."""
    n, h, w, c = x_nhwc.shape
    xp = jnp.pad(x_nhwc, ((0, 0), (1, 1), (1, 1), (0, 0)))
    ho = (h + 2 - 3) // stride + 1
    wo = (w + 2 - 3) // stride + 1
    cols = []
    for kh in range(3):
        for kw in range(3):
            cols.append(xp[:, kh:kh + stride * (ho - 1) + 1:stride,
                           kw:kw + stride * (wo - 1) + 1:stride, :])
    patches = jnp.concatenate(cols, axis=-1)                  # (N, Ho, Wo, 9*C)
    return patches.reshape(n * ho * wo, 9 * c), (n, ho, wo)


def _bn_scale_shift(s, sq, count, gamma, beta, eps):
    """Fold training-mode BatchNorm (batch statistics) into (scale, shift)."""
    mean = s / count
    var = jnp.maximum(sq / count - mean * mean, 0.0)   # biased variance
    scale = gamma * jax.lax.rsqrt(var + eps)
    shift = beta - mean * scale
    return scale, shift
    # TODO(synk): running_mean / running_var momentum-buffer updates are
    # training-time state mutation and are not produced here.


def residual_projection_forward(x_nchw, params, eps=1e-5):
    x = jnp.transpose(x_nchw, (0, 2, 3, 1)).astype(jnp.bfloat16)   # NCHW->NHWC
    c_out = params["w1"].shape[1]

    # ---- Pass A: conv1 (stride 2) + projection share one im2col slab --------
    a1, (n, ho, wo) = im2col(x, stride=2)
    m1 = a1.shape[0]
    c1, proj, s1, sq1 = conv1_proj_matmul(
        a1, params["w1"].astype(jnp.bfloat16), params["wp"].astype(jnp.bfloat16))
    scale1, shift1 = _bn_scale_shift(s1, sq1, jnp.float32(m1),
                                     params["gamma1"], params["beta1"], eps)

    # ---- Pass B: BN1 affine + ReLU ------------------------------------------
    h1 = bn_relu(c1, scale1.reshape(1, c_out), shift1.reshape(1, c_out))
    h1_img = h1[:m1].reshape(n, ho, wo, c_out)
    h1p = jnp.pad(h1_img, ((0, 0), (1, 1), (1, 1), (0, 0)))       # zero border

    # ---- Pass C: conv2 (stride 1) via halo'd row kernel (no im2col slab) ----
    c2_img, s2, sq2 = conv2_3x3(h1p, params["w2"].astype(jnp.bfloat16))
    scale2, shift2 = _bn_scale_shift(s2, sq2, jnp.float32(m1),
                                     params["gamma2"], params["beta2"], eps)
    shift2 = shift2 + params["bp"]          # projection bias folded into shift

    # ---- Pass D: BN2 affine + projection residual + ReLU --------------------
    mp = proj.shape[0]
    c2 = c2_img.reshape(m1, c_out)
    if mp != m1:
        c2 = jnp.pad(c2, ((0, mp - m1), (0, 0)))
    y = bn_add_relu(c2, proj, scale2.reshape(1, c_out), shift2.reshape(1, c_out))
    y_img = y[:m1].reshape(n, ho, wo, c_out)
    return jnp.transpose(y_img, (0, 3, 1, 2))                     # NHWC->NCHW


# -------------------------- pure-JAX reference --------------------------------

def reference_forward(x_nchw, w1, b1, w2, b2, wp, bp, eps=1e-5):
    x = jnp.transpose(x_nchw, (0, 2, 3, 1))

    def conv(h, w, b, s):
        y = jax.lax.conv_general_dilated(
            h, w, (s, s), ((1, 1), (1, 1)),
            dimension_numbers=("NHWC", "HWIO", "NHWC"))
        return y + b.reshape(1, 1, 1, -1)

    def bn(y):   # gamma=1, beta=0 (fresh init), training-mode batch statistics
        m = jnp.mean(y, axis=(0, 1, 2), keepdims=True)
        v = jnp.mean((y - m) ** 2, axis=(0, 1, 2), keepdims=True)
        return (y - m) * jax.lax.rsqrt(v + eps)

    h = jax.nn.relu(bn(conv(x, w1, b1, 2)))
    h = bn(conv(h, w2, b2, 1))
    p = conv(x, wp, bp, 2)
    return jnp.transpose(jax.nn.relu(h + p), (0, 3, 1, 2))


# --------------------------------- main ----------------------------------------

if __name__ == "__main__":
    key = jax.random.PRNGKey(0)
    n_in, n_out = 4, 8
    N, H, W = 2, 16, 16

    ks = jax.random.split(key, 4)
    x = jax.random.normal(ks[0], (N, n_in, H, W), jnp.float32)

    def init_conv(k, cin, cout):
        kw_, kb_ = jax.random.split(k)
        bound = 1.0 / (9 * cin) ** 0.5                      # PyTorch default-ish
        w = jax.random.uniform(kw_, (3, 3, cin, cout), jnp.float32, -bound, bound)
        b = jax.random.uniform(kb_, (cout,), jnp.float32, -bound, bound)
        return w, b

    w1_hwio, b1 = init_conv(ks[1], n_in, n_out)
    w2_hwio, b2 = init_conv(ks[2], n_out, n_out)
    wp_hwio, bp = init_conv(ks[3], n_in, n_out)

    # conv1 / conv2 biases are omitted from the Pallas path on purpose:
    # training-mode BatchNorm cancels them exactly (the reference keeps them).
    params = dict(
        w1=w1_hwio.reshape(9 * n_in, n_out),
        w2=w2_hwio.reshape(9 * n_out, n_out),
        wp=wp_hwio.reshape(9 * n_in, n_out),
        bp=bp,
        gamma1=jnp.ones((n_out,), jnp.float32),
        beta1=jnp.zeros((n_out,), jnp.float32),
        gamma2=jnp.ones((n_out,), jnp.float32),
        beta2=jnp.zeros((n_out,), jnp.float32),
    )

    out = jax.block_until_ready(residual_projection_forward(x, params))
    assert out.shape == (N, n_out, H // 2, W // 2), out.shape

    ref = reference_forward(x, w1_hwio, b1, w2_hwio, b2, wp_hwio, bp)
    max_err = float(jnp.max(jnp.abs(out - ref)))
    rms_err = float(jnp.sqrt(jnp.mean((out - ref) ** 2)))
    # bf16 slabs vs an all-f32 reference: allow bf16-level tolerances.
    assert rms_err < 2.5e-2, (max_err, rms_err)
    assert jnp.allclose(out, ref, atol=1e-1, rtol=5e-2), (max_err, rms_err)

    print("KERNEL_OK")
</pallas_src>

<mosaic_0001>
module attributes {stable_mosaic.version = 11 : i64} {
  func.func @_conv1_proj_kernel(%arg0: i32, %arg1: memref<128x36xbf16, #tpu.memory_space<vmem>>, %arg2: memref<36x8xbf16, #tpu.memory_space<vmem>>, %arg3: memref<36x8xbf16, #tpu.memory_space<vmem>>, %arg4: memref<128x8xbf16, #tpu.memory_space<vmem>>, %arg5: memref<128x8xbf16, #tpu.memory_space<vmem>>, %arg6: memref<1x1x8xf32, #tpu.memory_space<vmem>>, %arg7: memref<1x1x8xf32, #tpu.memory_space<vmem>>) attributes {dimension_semantics = [#tpu.dimension_semantics<parallel>], iteration_bounds = array<i64: 1>, scalar_prefetch = 0 : i64, scratch_operands = 0 : i64, tpu.core_type = #tpu.core_type<tc>, window_params = [{transform_indices = @transform_0, window_bounds = array<i64: 128, 36>}, {pipeline_mode = #tpu.pipeline_mode<synchronous>, transform_indices = @transform_1, window_bounds = array<i64: 36, 8>}, {pipeline_mode = #tpu.pipeline_mode<synchronous>, transform_indices = @transform_2, window_bounds = array<i64: 36, 8>}, {transform_indices = @transform_3, window_bounds = array<i64: 128, 8>}, {transform_indices = @transform_4, window_bounds = array<i64: 128, 8>}, {transform_indices = @transform_5, window_bounds = array<i64: 1, 1, 8>}, {transform_indices = @transform_6, window_bounds = array<i64: 1, 1, 8>}]} {
    %c0 = arith.constant 0 : index
    %c0_0 = arith.constant 0 : index
    %0 = vector.load %arg1[%c0, %c0_0] : memref<128x36xbf16, #tpu.memory_space<vmem>>, vector<128x36xbf16>
    %c0_1 = arith.constant 0 : index
    %c0_2 = arith.constant 0 : index
    %1 = vector.load %arg2[%c0_1, %c0_2] : memref<36x8xbf16, #tpu.memory_space<vmem>>, vector<36x8xbf16>
    %cst = arith.constant dense<0.000000e+00> : vector<128x8xf32>
    %2 = tpu.matmul %0, %1, %cst {dimension_numbers = #tpu.dot_dimension_numbers<[1], [0], [0], [1], [0, 0, 1, 1], [], []>} : vector<128x36xbf16>, vector<36x8xbf16>, vector<128x8xf32> -> vector<128x8xf32>
    %c0_3 = arith.constant 0 : index
    %c0_4 = arith.constant 0 : index
    %3 = vector.load %arg3[%c0_3, %c0_4] : memref<36x8xbf16, #tpu.memory_space<vmem>>, vector<36x8xbf16>
    %cst_5 = arith.constant dense<0.000000e+00> : vector<128x8xf32>
    %4 = tpu.matmul %0, %3, %cst_5 {dimension_numbers = #tpu.dot_dimension_numbers<[1], [0], [0], [1], [0, 0, 1, 1], [], []>} : vector<128x36xbf16>, vector<36x8xbf16>, vector<128x8xf32> -> vector<128x8xf32>
    %5 = arith.truncf %2 : vector<128x8xf32> to vector<128x8xbf16>
    %c0_6 = arith.constant 0 : index
    %c0_7 = arith.constant 0 : index
    %6 = vector.load %arg4[%c0_6, %c0_7] : memref<128x8xbf16, #tpu.memory_space<vmem>>, vector<128x8xbf16>
    tpu.vector_store %arg4[%c0_6, %c0_7], %5 {strides = array<i32>} : memref<128x8xbf16, #tpu.memory_space<vmem>>, vector<128x8xbf16>,
    %7 = arith.truncf %4 : vector<128x8xf32> to vector<128x8xbf16>
    %c0_8 = arith.constant 0 : index
    %c0_9 = arith.constant 0 : index
    %8 = vector.load %arg5[%c0_8, %c0_9] : memref<128x8xbf16, #tpu.memory_space<vmem>>, vector<128x8xbf16>
    tpu.vector_store %arg5[%c0_8, %c0_9], %7 {strides = array<i32>} : memref<128x8xbf16, #tpu.memory_space<vmem>>, vector<128x8xbf16>,
    %cst_10 = arith.constant dense<0.000000e+00> : vector<8xf32>
    %9 = vector.multi_reduction <add>, %2, %cst_10 [0] : vector<128x8xf32> to vector<8xf32>
    %10 = vector.shape_cast %9 : vector<8xf32> to vector<1x8xf32>
    %c0_11 = arith.constant 0 : index
    %c0_12 = arith.constant 0 : index
    %c0_13 = arith.constant 0 : index
    %11 = vector.load %arg6[%c0_11, %c0_12, %c0_13] : memref<1x1x8xf32, #tpu.memory_space<vmem>>, vector<1x1x8xf32>
    %12 = vector.shape_cast %11 : vector<1x1x8xf32> to vector<1x8xf32>
    %13 = vector.shape_cast %10 : vector<1x8xf32> to vector<1x1x8xf32>
    tpu.vector_store %arg6[%c0_11, %c0_12, %c0_13], %13 {strides = array<i32>} : memref<1x1x8xf32, #tpu.memory_space<vmem>>, vector<1x1x8xf32>,
    %14 = arith.mulf %2, %2 : vector<128x8xf32>
    %cst_14 = arith.constant dense<0.000000e+00> : vector<8xf32>
    %15 = vector.multi_reduction <add>, %14, %cst_14 [0] : vector<128x8xf32> to vector<8xf32>
    %16 = vector.shape_cast %15 : vector<8xf32> to vector<1x8xf32>
    %c0_15 = arith.constant 0 : index
    %c0_16 = arith.constant 0 : index
    %c0_17 = arith.constant 0 : index
    %17 = vector.load %arg7[%c0_15, %c0_16, %c0_17] : memref<1x1x8xf32, #tpu.memory_space<vmem>>, vector<1x1x8xf32>
    %18 = vector.shape_cast %17 : vector<1x1x8xf32> to vector<1x8xf32>
    %19 = vector.shape_cast %16 : vector<1x8xf32> to vector<1x1x8xf32>
    tpu.vector_store %arg7[%c0_15, %c0_16, %c0_17], %19 {strides = array<i32>} : memref<1x1x8xf32, #tpu.memory_space<vmem>>, vector<1x1x8xf32>,
    return
  }
  func.func @transform_0(%arg0: i32) -> (i32, i32) {
    %c0_i32 = arith.constant 0 : i32
    %c0_i32_0 = arith.constant 0 : i32
    return %arg0, %c0_i32 : i32, i32
  }
  func.func @transform_1(%arg0: i32) -> (i32, i32) {
    %c0_i32 = arith.constant 0 : i32
    %c0_i32_0 = arith.constant 0 : i32
    %c0_i32_1 = arith.constant 0 : i32
    return %c0_i32, %c0_i32_0 : i32, i32
  }
  func.func @transform_2(%arg0: i32) -> (i32, i32) {
    %c0_i32 = arith.constant 0 : i32
    %c0_i32_0 = arith.constant 0 : i32
    %c0_i32_1 = arith.constant 0 : i32
    return %c0_i32, %c0_i32_0 : i32, i32
  }
  func.func @transform_3(%arg0: i32) -> (i32, i32) {
    %c0_i32 = arith.constant 0 : i32
    %c0_i32_0 = arith.constant 0 : i32
    return %arg0, %c0_i32 : i32, i32
  }
  func.func @transform_4(%arg0: i32) -> (i32, i32) {
    %c0_i32 = arith.constant 0 : i32
    %c0_i32_0 = arith.constant 0 : i32
    return %arg0, %c0_i32 : i32, i32
  }
  func.func @transform_5(%arg0: i32) -> (i32, i32, i32) {
    %c0_i32 = arith.constant 0 : i32
    %c0_i32_0 = arith.constant 0 : i32
    %c0_i32_1 = arith.constant 0 : i32
    return %arg0, %c0_i32, %c0_i32_0 : i32, i32, i32
  }
  func.func @transform_6(%arg0: i32) -> (i32, i32, i32) {
    %c0_i32 = arith.constant 0 : i32
    %c0_i32_0 = arith.constant 0 : i32
    %c0_i32_1 = arith.constant 0 : i32
    return %arg0, %c0_i32, %c0_i32_0 : i32, i32, i32
  }
}

</mosaic_0001>

<llo_original>
// kernel: tpu_custom_call.1
$region0: #{tpu_custom_call.1}
  #allocation0 [shape = 'u32[]', space=smem, size = 0x4, offset = 0x4, fixed_abs, tag = 'smem constant byte address 0x4 - core index']
  #allocation1 [shape = 'u32[144,128]{1,0:T(1,128)}', space=vmem, size = 0x12000, scoped, tag = 'internal scratch']
  %s0 = inlined_call_operand.vmem [shape: bf16[128,36], index: 0, kind: input, shape index: {}]
  %s1 = inlined_call_operand.vmem [shape: bf16[36,8], index: 1, kind: input, shape index: {}]
  %s2 = inlined_call_operand.vmem [shape: bf16[36,8], index: 2, kind: input, shape index: {}]
  %s3 = inlined_call_operand.vmem [shape: bf16[128,8], index: 3, kind: output, shape index: {0}]
  %s4 = inlined_call_operand.vmem [shape: bf16[128,8], index: 4, kind: output, shape index: {1}]
  %s5 = inlined_call_operand.hbm [shape: f32[1,1,8], index: 5, kind: output, shape index: {2}]
  %s6 = inlined_call_operand.hbm [shape: f32[1,1,8], index: 6, kind: output, shape index: {3}]
  %7 = xla_tuple %s3, %s4, %s5, %s6
  %s8 = sld [smem:[#allocation0]]
  $region46: #{tpu_custom_call.1} parent=0
    _
  %s10 = ssub.s32 1, %s8
  %s11 = scalar_select 0, %s10, %s8
  $region1: #{tpu_custom_call.1} parent=0
    #allocation2 [shape = 'u8[512]{0}', space=vmem, size = 0x400, scoped, tag = 'output window, operand 2, single buffered']
    #allocation3 [shape = 's32[1]{0}', space=sflag, size = 0x4, scoped, tag = 'scoped memory for tpu_custom_call.1']
    #allocation4 [shape = 'u8[512]{0}', space=vmem, size = 0x400, scoped, tag = 'output window, operand 3, single buffered']
    #allocation5 [shape = 's32[1]{0}', space=sflag, size = 0x4, scoped, tag = 'scoped memory for tpu_custom_call.1']
    %12 = vsyncpa [#allocation3], 0
    %13 = vsyncpa [#allocation5], 0
    // Predicated region
    $region2: #{tpu_custom_call.1} parent=1 // pred_check
      _
    $region3: #{tpu_custom_call.1} parent=1 // pred_check_branch
      %15 = sbr.rel (0) target = $region5
    $region4: #{tpu_custom_call.1} parent=1 // pred_region
      _
    $region5: #{tpu_custom_call.1} parent=1 // pred_fallthru
      _
    // Predicated region
    $region6: #{tpu_custom_call.1} parent=1 // pred_check
      _
    $region7: #{tpu_custom_call.1} parent=1 // pred_check_branch
      %17 = sbr.rel (0) target = $region9
    $region8: #{tpu_custom_call.1} parent=1 // pred_region
      _
    $region9: #{tpu_custom_call.1} parent=1 // pred_fallthru
      _
    // Predicated region
    $region10: #{tpu_custom_call.1} parent=1 // pred_check
      _
    $region11: #{tpu_custom_call.1} parent=1 // pred_check_branch
      %19 = sbr.rel (0) target = $region13
    $region12: #{tpu_custom_call.1} parent=1 // pred_region
      _
    $region13: #{tpu_custom_call.1} parent=1 // pred_fallthru
      _
    %v21 = vld [vmem:[%s0] sm:$0xf]
    %v22 = vld [vmem:[%s0 + $0x4] sm:$0xf]
    %v23 = vld [vmem:[%s0 + $0x8] sm:$0xf]
    %v24 = vld [vmem:[%s0 + $0xc] sm:$0xf]
    %v25 = vld [vmem:[%s0 + $0x10] sm:$0xf]
    %v26 = vld [vmem:[%s0 + $0x14] sm:$0xf]
    %v27 = vld [vmem:[%s0 + $0x18] sm:$0xf]
    %v28 = vld [vmem:[%s0 + $0x1c] sm:$0xf]
    %v29 = vld [vmem:[%s0 + $0x20] sm:$0xf]
    %v30 = vld [vmem:[%s0 + $0x24] sm:$0xf]
    %v31 = vld [vmem:[%s0 + $0x28] sm:$0xf]
    %v32 = vld [vmem:[%s0 + $0x2c] sm:$0xf]
    %v33 = vld [vmem:[%s0 + $0x30] sm:$0xf]
    %v34 = vld [vmem:[%s0 + $0x34] sm:$0xf]
    %v35 = vld [vmem:[%s0 + $0x38] sm:$0xf]
    %v36 = vld [vmem:[%s0 + $0x3c] sm:$0xf]
    %v37 = vld [vmem:[%s1] sm:$0xf]
    %v38 = vld [vmem:[%s1 + $0x4] sm:$0xf]
    %v39 = vld [vmem:[%s1 + $0x8] sm:$0xf]
    %v40 = vld [vmem:[%s1 + $0xc] sm:$0xf]
    %v41 = vld [vmem:[%s1 + $0x10] sm:$0x3]
    %v58 = vunpack.c.l.b16 %v21
    %v59 = vunpack.c.l.b16 %v22
    %v60 = vunpack.c.l.b16 %v23
    %v61 = vunpack.c.l.b16 %v24
    %v62 = vunpack.c.l.b16 %v25
    %v63 = vunpack.c.l.b16 %v26
    %v64 = vunpack.c.l.b16 %v27
    %v65 = vunpack.c.l.b16 %v28
    %v66 = vunpack.c.l.b16 %v29
    %v67 = vunpack.c.l.b16 %v30
    %v68 = vunpack.c.l.b16 %v31
    %v69 = vunpack.c.l.b16 %v32
    %v70 = vunpack.c.l.b16 %v33
    %v71 = vunpack.c.l.b16 %v34
    %v72 = vunpack.c.l.b16 %v35
    %v73 = vunpack.c.l.b16 %v36
    %v74 = vpack.c.b16 %v59, %v58
    %v75 = vpack.c.b16 %v61, %v60
    %v76 = vpack.c.b16 %v63, %v62
    %v77 = vpack.c.b16 %v65, %v64
    %v78 = vpack.c.b16 %v67, %v66
    %v79 = vpack.c.b16 %v69, %v68
    %v80 = vpack.c.b16 %v71, %v70
    %v81 = vpack.c.b16 %v73, %v72
    %v87 = vunpack.c.l.b16 %v37
    %v88 = vunpack.c.l.b16 %v38
    %v89 = vunpack.c.l.b16 %v39
    %v90 = vunpack.c.l.b16 %v40
    %v91 = vunpack.c.l.b16 %v41
    %v92 = vpack.c.b16 %v88, %v87
    %v93 = vpack.c.b16 %v90, %v89
    %v94 = vpack.c.b16 %v91, %v91
    %vm97 = vcmask 293888
    %v99 = vsel %vm97, %v74, 0
    %v102 = vsel %vm97, %v75, 0
    %v105 = vsel %vm97, %v76, 0
    %v108 = vsel %vm97, %v77, 0
    %v111 = vsel %vm97, %v78, 0
    %v114 = vsel %vm97, %v79, 0
    %v117 = vsel %vm97, %v80, 0
    %v120 = vsel %vm97, %v81, 0
    %vm122 = vcmask 1041408
    %v124 = vsel %vm122, %v94, 0
    %126 = vmatprep.subr.bf16.mxu0 0
    %127 = vmatpush1.bf16.msra.mxu0 %v92
    %128 = vmatprep.subr.bf16.mxu0 0
    %129 = vmatpush1.bf16.msra.mxu0 %v93
    %130 = vmatprep.subr.bf16.mxu0 0
    %131 = vmatpush1.bf16.msra.mxu0 %v124
    %132 = vmatprep.subr.bf16.mxu0 0
    %133 = vmatpush1.bf16.msra.mxu0 0
    %134 = vmatprep.subr.bf16.mxu0 0
    %135 = vmatpush1.bf16.msra.mxu0 0
    %136 = vmatprep.subr.bf16.mxu0 0
    %137 = vmatpush1.bf16.msra.mxu0 0
    %138 = vmatprep.subr.bf16.mxu0 0
    %139 = vmatpush1.bf16.msra.mxu0 0
    %140 = vmatprep.subr.bf16.mxu0 0
    %141 = vmatpush1.bf16.msra.mxu0 0
    %142 = vmatprep.subr.bf16.mxu0 0
    %143 = vmatpush1.bf16.msra.mxu0 0
    %144 = vmatprep.subr.bf16.mxu0 0
    %145 = vmatpush1.bf16.msra.mxu0 0
    %146 = vmatprep.subr.bf16.mxu0 0
    %147 = vmatpush1.bf16.msra.mxu0 0
    %148 = vmatprep.subr.bf16.mxu0 0
    %149 = vmatpush1.bf16.msra.mxu0 0
    %150 = vmatprep.subr.bf16.mxu0 0
    %151 = vmatpush1.bf16.msra.mxu0 0
    %152 = vmatprep.subr.bf16.mxu0 0
    %153 = vmatpush1.bf16.msra.mxu0 0
    %154 = vmatprep.subr.bf16.mxu0 0
    %155 = vmatpush1.bf16.msra.mxu0 0
    %156 = vmatprep.subr.bf16.mxu0 0
    %157 = vmatpush1.bf16.msra.mxu0 0
    %158 = vmatprep.mubr.bf16.mxu0 0
    %159 = vmatmul.mubr.bf16.gmra.mrb[0].mxu0 %v99
    %v160 = vpop.f32.mrb[0].mxu0
    %v161 = vadd.f32 0.0, %v160
    %v162 = vpop.f32.mrb[0].mxu0
    %v163 = vpop.f32.mrb[0].mxu0
    %v164 = vadd.f32 0.0, %v163
    %v165 = vpop.f32.mrb[0].mxu0
    %166 = vmatprep.mubr.bf16.mxu0 0
    %167 = vmatmul.mubr.bf16.gmra.mrb[0].mxu0 %v102
    %v168 = vpop.f32.mrb[0].mxu0
    %v169 = vadd.f32 0.0, %v168
    %v170 = vpop.f32.mrb[0].mxu0
    %v171 = vpop.f32.mrb[0].mxu0
    %v172 = vadd.f32 0.0, %v171
    %v173 = vpop.f32.mrb[0].mxu0
    %174 = vmatprep.mubr.bf16.mxu0 0
    %175 = vmatmul.mubr.bf16.gmra.mrb[0].mxu0 %v105
    %v176 = vpop.f32.mrb[0].mxu0
    %v177 = vadd.f32 0.0, %v176
    %v178 = vpop.f32.mrb[0].mxu0
    %v179 = vpop.f32.mrb[0].mxu0
    %v180 = vadd.f32 0.0, %v179
    %v181 = vpop.f32.mrb[0].mxu0
    %182 = vmatprep.mubr.bf16.mxu0 0
    %183 = vmatmul.mubr.bf16.gmra.mrb[0].mxu0 %v108
    %v184 = vpop.f32.mrb[0].mxu0
    %v185 = vadd.f32 0.0, %v184
    %v186 = vpop.f32.mrb[0].mxu0
    %v187 = vpop.f32.mrb[0].mxu0
    %v188 = vadd.f32 0.0, %v187
    %v189 = vpop.f32.mrb[0].mxu0
    %190 = vmatprep.mubr.bf16.mxu0 0
    %191 = vmatmul.mubr.bf16.gmra.mrb[0].mxu0 %v111
    %v192 = vpop.f32.mrb[0].mxu0
    %v193 = vadd.f32 0.0, %v192
    %v194 = vpop.f32.mrb[0].mxu0
    %v195 = vpop.f32.mrb[0].mxu0
    %v196 = vadd.f32 0.0, %v195
    %v197 = vpop.f32.mrb[0].mxu0
    %198 = vmatprep.mubr.bf16.mxu0 0
    %199 = vmatmul.mubr.bf16.gmra.mrb[0].mxu0 %v114
    %v200 = vpop.f32.mrb[0].mxu0
    %v201 = vadd.f32 0.0, %v200
    %v202 = vpop.f32.mrb[0].mxu0
    %v203 = vpop.f32.mrb[0].mxu0
    %v204 = vadd.f32 0.0, %v203
    %v205 = vpop.f32.mrb[0].mxu0
    %206 = vmatprep.mubr.bf16.mxu0 0
    %207 = vmatmul.mubr.bf16.gmra.mrb[0].mxu0 %v117
    %v208 = vpop.f32.mrb[0].mxu0
    %v209 = vadd.f32 0.0, %v208
    %v210 = vpop.f32.mrb[0].mxu0
    %v211 = vpop.f32.mrb[0].mxu0
    %v212 = vadd.f32 0.0, %v211
    %v213 = vpop.f32.mrb[0].mxu0
    %214 = vmatprep.mubr.bf16.mxu0 0
    %215 = vmatmul.mubr.bf16.gmra.mrb[0].mxu0 %v120
    %v216 = vpop.f32.mrb[0].mxu0
    %v217 = vadd.f32 0.0, %v216
    %v218 = vpop.f32.mrb[0].mxu0
    %v219 = vpop.f32.mrb[0].mxu0
    %v220 = vadd.f32 0.0, %v219
    %v221 = vpop.f32.mrb[0].mxu0
    %222 = vdwg.mxu0
    %v223 = vld [vmem:[%s2] sm:$0xf]
    %v224 = vld [vmem:[%s2 + $0x4] sm:$0xf]
    %v225 = vld [vmem:[%s2 + $0x8] sm:$0xf]
    %v226 = vld [vmem:[%s2 + $0xc] sm:$0xf]
    %v227 = vld [vmem:[%s2 + $0x10] sm:$0x3]
    %v233 = vunpack.c.l.b16 %v223
    %v234 = vunpack.c.l.b16 %v224
    %v235 = vunpack.c.l.b16 %v225
    %v236 = vunpack.c.l.b16 %v226
    %v237 = vunpack.c.l.b16 %v227
    %v238 = vpack.c.b16 %v234, %v233
    %v239 = vpack.c.b16 %v236, %v235
    %v240 = vpack.c.b16 %v237, %v237
    %v244 = vsel %vm122, %v240, 0
    %246 = vmatprep.subr.bf16.mxu0 0
    %247 = vmatpush1.bf16.msra.mxu0 %v238
    %248 = vmatprep.subr.bf16.mxu0 0
    %249 = vmatpush1.bf16.msra.mxu0 %v239
    %250 = vmatprep.subr.bf16.mxu0 0
    %251 = vmatpush1.bf16.msra.mxu0 %v244
    %252 = vmatprep.subr.bf16.mxu0 0
    %253 = vmatpush1.bf16.msra.mxu0 0
    %254 = vmatprep.subr.bf16.mxu0 0
    %255 = vmatpush1.bf16.msra.mxu0 0
    %256 = vmatprep.subr.bf16.mxu0 0
    %257 = vmatpush1.bf16.msra.mxu0 0
    %258 = vmatprep.subr.bf16.mxu0 0
    %259 = vmatpush1.bf16.msra.mxu0 0
    %260 = vmatprep.subr.bf16.mxu0 0
    %261 = vmatpush1.bf16.msra.mxu0 0
    %262 = vmatprep.subr.bf16.mxu0 0
    %263 = vmatpush1.bf16.msra.mxu0 0
    %264 = vmatprep.subr.bf16.mxu0 0
    %265 = vmatpush1.bf16.msra.mxu0 0
    %266 = vmatprep.subr.bf16.mxu0 0
    %267 = vmatpush1.bf16.msra.mxu0 0
    %268 = vmatprep.subr.bf16.mxu0 0
    %269 = vmatpush1.bf16.msra.mxu0 0
    %270 = vmatprep.subr.bf16.mxu0 0
    %271 = vmatpush1.bf16.msra.mxu0 0
    %272 = vmatprep.subr.bf16.mxu0 0
    %273 = vmatpush1.bf16.msra.mxu0 0
    %274 = vmatprep.subr.bf16.mxu0 0
    %275 = vmatpush1.bf16.msra.mxu0 0
    %276 = vmatprep.subr.bf16.mxu0 0
    %277 = vmatpush1.bf16.msra.mxu0 0
    %278 = vmatprep.mubr.bf16.mxu0 0
    %279 = vmatmul.mubr.bf16.gmra.mrb[0].mxu0 %v99
    %v280 = vpop.f32.mrb[0].mxu0
    %v281 = vadd.f32 0.0, %v280
    %v282 = vpop.f32.mrb[0].mxu0
    %v283 = vpop.f32.mrb[0].mxu0
    %v284 = vadd.f32 0.0, %v283
    %v285 = vpop.f32.mrb[0].mxu0
    %286 = vmatprep.mubr.bf16.mxu0 0
    %287 = vmatmul.mubr.bf16.gmra.mrb[0].mxu0 %v102
    %v288 = vpop.f32.mrb[0].mxu0
    %v289 = vadd.f32 0.0, %v288
    %v290 = vpop.f32.mrb[0].mxu0
    %v291 = vpop.f32.mrb[0].mxu0
    %v292 = vadd.f32 0.0, %v291
    %v293 = vpop.f32.mrb[0].mxu0
    %294 = vmatprep.mubr.bf16.mxu0 0
    %295 = vmatmul.mubr.bf16.gmra.mrb[0].mxu0 %v105
    %v296 = vpop.f32.mrb[0].mxu0
    %v297 = vadd.f32 0.0, %v296
    %v298 = vpop.f32.mrb[0].mxu0
    %v299 = vpop.f32.mrb[0].mxu0
    %v300 = vadd.f32 0.0, %v299
    %v301 = vpop.f32.mrb[0].mxu0
    %302 = vmatprep.mubr.bf16.mxu0 0
    %303 = vmatmul.mubr.bf16.gmra.mrb[0].mxu0 %v108
    %v304 = vpop.f32.mrb[0].mxu0
    %v305 = vadd.f32 0.0, %v304
    %v306 = vpop.f32.mrb[0].mxu0
    %v307 = vpop.f32.mrb[0].mxu0
    %v308 = vadd.f32 0.0, %v307
    %v309 = vpop.f32.mrb[0].mxu0
    %310 = vmatprep.mubr.bf16.mxu0 0
    %311 = vmatmul.mubr.bf16.gmra.mrb[0].mxu0 %v111
    %v312 = vpop.f32.mrb[0].mxu0
    %v313 = vadd.f32 0.0, %v312
    %v314 = vpop.f32.mrb[0].mxu0
    %v315 = vpop.f32.mrb[0].mxu0
    %v316 = vadd.f32 0.0, %v315
    %v317 = vpop.f32.mrb[0].mxu0
    %318 = vmatprep.mubr.bf16.mxu0 0
    %319 = vmatmul.mubr.bf16.gmra.mrb[0].mxu0 %v114
    %v320 = vpop.f32.mrb[0].mxu0
    %v321 = vadd.f32 0.0, %v320
    %v322 = vpop.f32.mrb[0].mxu0
    %v323 = vpop.f32.mrb[0].mxu0
    %v324 = vadd.f32 0.0, %v323
    %v325 = vpop.f32.mrb[0].mxu0
    %326 = vmatprep.mubr.bf16.mxu0 0
    %327 = vmatmul.mubr.bf16.gmra.mrb[0].mxu0 %v117
    %v328 = vpop.f32.mrb[0].mxu0
    %v329 = vadd.f32 0.0, %v328
    %v330 = vpop.f32.mrb[0].mxu0
    %v331 = vpop.f32.mrb[0].mxu0
    %v332 = vadd.f32 0.0, %v331
    %v333 = vpop.f32.mrb[0].mxu0
    %334 = vmatprep.mubr.bf16.mxu0 0
    %335 = vmatmul.mubr.bf16.gmra.mrb[0].mxu0 %v120
    %v336 = vpop.f32.mrb[0].mxu0
    %v337 = vadd.f32 0.0, %v336
    %v338 = vpop.f32.mrb[0].mxu0
    %v339 = vpop.f32.mrb[0].mxu0
    %v340 = vadd.f32 0.0, %v339
    %v341 = vpop.f32.mrb[0].mxu0
    %342 = vdwg.mxu0
    %v343 = vpack.c.bf16 %v164, %v161
    %v344 = vpack.c.bf16 %v172, %v169
    %v345 = vpack.c.bf16 %v180, %v177
    %v346 = vpack.c.bf16 %v188, %v185
    %v347 = vpack.c.bf16 %v196, %v193
    %v348 = vpack.c.bf16 %v204, %v201
    %v349 = vpack.c.bf16 %v212, %v209
    %v350 = vpack.c.bf16 %v220, %v217
    %v359 = vunpack.c.l.b16 %v343
    %v360 = vunpack.c.h.b16 %v343
    %v361 = vunpack.c.l.b16 %v344
    %v362 = vunpack.c.h.b16 %v344
    %v363 = vunpack.c.l.b16 %v345
    %v364 = vunpack.c.h.b16 %v345
    %v365 = vunpack.c.l.b16 %v346
    %v366 = vunpack.c.h.b16 %v346
    %v367 = vunpack.c.l.b16 %v347
    %v368 = vunpack.c.h.b16 %v347
    %v369 = vunpack.c.l.b16 %v348
    %v370 = vunpack.c.h.b16 %v348
    %v371 = vunpack.c.l.b16 %v349
    %v372 = vunpack.c.h.b16 %v349
    %v373 = vunpack.c.l.b16 %v350
    %v374 = vunpack.c.h.b16 %v350
    %v375 = vpack.c.b16 %v359, %v359
    %v376 = vpack.c.b16 %v360, %v360
    %v377 = vpack.c.b16 %v361, %v361
    %v378 = vpack.c.b16 %v362, %v362
    %v379 = vpack.c.b16 %v363, %v363
    %v380 = vpack.c.b16 %v364, %v364
    %v381 = vpack.c.b16 %v365, %v365
    %v382 = vpack.c.b16 %v366, %v366
    %v383 = vpack.c.b16 %v367, %v367
    %v384 = vpack.c.b16 %v368, %v368
    %v385 = vpack.c.b16 %v369, %v369
    %v386 = vpack.c.b16 %v370, %v370
    %v387 = vpack.c.b16 %v371, %v371
    %v388 = vpack.c.b16 %v372, %v372
    %v389 = vpack.c.b16 %v373, %v373
    %v390 = vpack.c.b16 %v374, %v374
    %vm407 = vcmask 60416
    %408 = vst.msk [vmem:[%s3] sm:$0xf] %vm407, %v375
    %409 = vst.msk [vmem:[%s3 + $0x4] sm:$0xf] %vm407, %v376
    %410 = vst.msk [vmem:[%s3 + $0x8] sm:$0xf] %vm407, %v377
    %411 = vst.msk [vmem:[%s3 + $0xc] sm:$0xf] %vm407, %v378
    %412 = vst.msk [vmem:[%s3 + $0x10] sm:$0xf] %vm407, %v379
    %413 = vst.msk [vmem:[%s3 + $0x14] sm:$0xf] %vm407, %v380
    %414 = vst.msk [vmem:[%s3 + $0x18] sm:$0xf] %vm407, %v381
    %415 = vst.msk [vmem:[%s3 + $0x1c] sm:$0xf] %vm407, %v382
    %416 = vst.msk [vmem:[%s3 + $0x20] sm:$0xf] %vm407, %v383
    %417 = vst.msk [vmem:[%s3 + $0x24] sm:$0xf] %vm407, %v384
    %418 = vst.msk [vmem:[%s3 + $0x28] sm:$0xf] %vm407, %v385
    %419 = vst.msk [vmem:[%s3 + $0x2c] sm:$0xf] %vm407, %v386
    %420 = vst.msk [vmem:[%s3 + $0x30] sm:$0xf] %vm407, %v387
    %421 = vst.msk [vmem:[%s3 + $0x34] sm:$0xf] %vm407, %v388
    %422 = vst.msk [vmem:[%s3 + $0x38] sm:$0xf] %vm407, %v389
    %423 = vst.msk [vmem:[%s3 + $0x3c] sm:$0xf] %vm407, %v390
    %v424 = vpack.c.bf16 %v284, %v281
    %v425 = vpack.c.bf16 %v292, %v289
    %v426 = vpack.c.bf16 %v300, %v297
    %v427 = vpack.c.bf16 %v308, %v305
    %v428 = vpack.c.bf16 %v316, %v313
    %v429 = vpack.c.bf16 %v324, %v321
    %v430 = vpack.c.bf16 %v332, %v329
    %v431 = vpack.c.bf16 %v340, %v337
    %v440 = vunpack.c.l.b16 %v424
    %v441 = vunpack.c.h.b16 %v424
    %v442 = vunpack.c.l.b16 %v425
    %v443 = vunpack.c.h.b16 %v425
    %v444 = vunpack.c.l.b16 %v426
    %v445 = vunpack.c.h.b16 %v426
    %v446 = vunpack.c.l.b16 %v427
    %v447 = vunpack.c.h.b16 %v427
    %v448 = vunpack.c.l.b16 %v428
    %v449 = vunpack.c.h.b16 %v428
    %v450 = vunpack.c.l.b16 %v429
    %v451 = vunpack.c.h.b16 %v429
    %v452 = vunpack.c.l.b16 %v430
    %v453 = vunpack.c.h.b16 %v430
    %v454 = vunpack.c.l.b16 %v431
    %v455 = vunpack.c.h.b16 %v431
    %v456 = vpack.c.b16 %v440, %v440
    %v457 = vpack.c.b16 %v441, %v441
    %v458 = vpack.c.b16 %v442, %v442
    %v459 = vpack.c.b16 %v443, %v443
    %v460 = vpack.c.b16 %v444, %v444
    %v461 = vpack.c.b16 %v445, %v445
    %v462 = vpack.c.b16 %v446, %v446
    %v463 = vpack.c.b16 %v447, %v447
    %v464 = vpack.c.b16 %v448, %v448
    %v465 = vpack.c.b16 %v449, %v449
    %v466 = vpack.c.b16 %v450, %v450
    %v467 = vpack.c.b16 %v451, %v451
    %v468 = vpack.c.b16 %v452, %v452
    %v469 = vpack.c.b16 %v453, %v453
    %v470 = vpack.c.b16 %v454, %v454
    %v471 = vpack.c.b16 %v455, %v455
    %488 = vst.msk [vmem:[%s4] sm:$0xf] %vm407, %v456
    %489 = vst.msk [vmem:[%s4 + $0x4] sm:$0xf] %vm407, %v457
    %490 = vst.msk [vmem:[%s4 + $0x8] sm:$0xf] %vm407, %v458
    %491 = vst.msk [vmem:[%s4 + $0xc] sm:$0xf] %vm407, %v459
    %492 = vst.msk [vmem:[%s4 + $0x10] sm:$0xf] %vm407, %v460
    %493 = vst.msk [vmem:[%s4 + $0x14] sm:$0xf] %vm407, %v461
    %494 = vst.msk [vmem:[%s4 + $0x18] sm:$0xf] %vm407, %v462
    %495 = vst.msk [vmem:[%s4 + $0x1c] sm:$0xf] %vm407, %v463
    %496 = vst.msk [vmem:[%s4 + $0x20] sm:$0xf] %vm407, %v464
    %497 = vst.msk [vmem:[%s4 + $0x24] sm:$0xf] %vm407, %v465
    %498 = vst.msk [vmem:[%s4 + $0x28] sm:$0xf] %vm407, %v466
    %499 = vst.msk [vmem:[%s4 + $0x2c] sm:$0xf] %vm407, %v467
    %500 = vst.msk [vmem:[%s4 + $0x30] sm:$0xf] %vm407, %v468
    %501 = vst.msk [vmem:[%s4 + $0x34] sm:$0xf] %vm407, %v469
    %502 = vst.msk [vmem:[%s4 + $0x38] sm:$0xf] %vm407, %v470
    %503 = vst.msk [vmem:[%s4 + $0x3c] sm:$0xf] %vm407, %v471
    %vm504 = vcmask 64512
    %v505 = vsel %vm504, %v161, 0.0
    %v506 = vsel %vm504, %v164, 0.0
    %v507 = vadd.f32 %v505, %v506
    %v508 = vsel %vm504, %v169, 0.0
    %v509 = vadd.f32 %v507, %v508
    %v510 = vsel %vm504, %v172, 0.0
    %v511 = vadd.f32 %v509, %v510
    %v512 = vsel %vm504, %v177, 0.0
    %v513 = vadd.f32 %v511, %v512
    %v514 = vsel %vm504, %v180, 0.0
    %v515 = vadd.f32 %v513, %v514
    %v516 = vsel %vm504, %v185, 0.0
    %v517 = vadd.f32 %v515, %v516
    %v518 = vsel %vm504, %v188, 0.0
    %v519 = vadd.f32 %v517, %v518
    %v520 = vsel %vm504, %v193, 0.0
    %v521 = vadd.f32 %v519, %v520
    %v522 = vsel %vm504, %v196, 0.0
    %v523 = vadd.f32 %v521, %v522
    %v524 = vsel %vm504, %v201, 0.0
    %v525 = vadd.f32 %v523, %v524
    %v526 = vsel %vm504, %v204, 0.0
    %v527 = vadd.f32 %v525, %v526
    %v528 = vsel %vm504, %v209, 0.0
    %v529 = vadd.f32 %v527, %v528
    %v530 = vsel %vm504, %v212, 0.0
    %v531 = vadd.f32 %v529, %v530
    %v532 = vsel %vm504, %v217, 0.0
    %v533 = vadd.f32 %v531, %v532
    %v534 = vsel %vm504, %v220, 0.0
    %v535 = vadd.f32 %v533, %v534
    %v536 = vrot.slane %v535, 4
    %v537 = vadd.f32 %v535, %v536
    %v538 = vrot.slane %v537, 2
    %v539 = vadd.f32 %v537, %v538
    %v540 = vrot.slane %v539, 1
    %v541 = vadd.f32 %v539, %v540
    %vm542 = vcmask 57344
    %543 = vst.msk [vmem:[#allocation2] sm:$0x1] %vm542, %v541
    %v544 = vmul.f32 %v161, %v161
    %v545 = vmul.f32 %v164, %v164
    %v546 = vmul.f32 %v169, %v169
    %v547 = vmul.f32 %v172, %v172
    %v548 = vmul.f32 %v177, %v177
    %v549 = vmul.f32 %v180, %v180
    %v550 = vmul.f32 %v185, %v185
    %v551 = vmul.f32 %v188, %v188
    %v552 = vmul.f32 %v193, %v193
    %v553 = vmul.f32 %v196, %v196
    %v554 = vmul.f32 %v201, %v201
    %v555 = vmul.f32 %v204, %v204
    %v556 = vmul.f32 %v209, %v209
    %v557 = vmul.f32 %v212, %v212
    %v558 = vmul.f32 %v217, %v217
    %v559 = vmul.f32 %v220, %v220
    %v560 = vsel %vm504, %v544, 0.0
    %v561 = vsel %vm504, %v545, 0.0
    %v562 = vadd.f32 %v560, %v561
    %v563 = vsel %vm504, %v546, 0.0
    %v564 = vadd.f32 %v562, %v563
    %v565 = vsel %vm504, %v547, 0.0
    %v566 = vadd.f32 %v564, %v565
    %v567 = vsel %vm504, %v548, 0.0
    %v568 = vadd.f32 %v566, %v567
    %v569 = vsel %vm504, %v549, 0.0
    %v570 = vadd.f32 %v568, %v569
    %v571 = vsel %vm504, %v550, 0.0
    %v572 = vadd.f32 %v570, %v571
    %v573 = vsel %vm504, %v551, 0.0
    %v574 = vadd.f32 %v572, %v573
    %v575 = vsel %vm504, %v552, 0.0
    %v576 = vadd.f32 %v574, %v575
    %v577 = vsel %vm504, %v553, 0.0
    %v578 = vadd.f32 %v576, %v577
    %v579 = vsel %vm504, %v554, 0.0
    %v580 = vadd.f32 %v578, %v579
    %v581 = vsel %vm504, %v555, 0.0
    %v582 = vadd.f32 %v580, %v581
    %v583 = vsel %vm504, %v556, 0.0
    %v584 = vadd.f32 %v582, %v583
    %v585 = vsel %vm504, %v557, 0.0
    %v586 = vadd.f32 %v584, %v585
    %v587 = vsel %vm504, %v558, 0.0
    %v588 = vadd.f32 %v586, %v587
    %v589 = vsel %vm504, %v559, 0.0
    %v590 = vadd.f32 %v588, %v589
    %v591 = vrot.slane %v590, 4
    %v592 = vadd.f32 %v590, %v591
    %v593 = vrot.slane %v592, 2
    %v594 = vadd.f32 %v592, %v593
    %v595 = vrot.slane %v594, 1
    %v596 = vadd.f32 %v594, %v595
    %597 = vst.msk [vmem:[#allocation4] sm:$0x1] %vm542, %v596
    // Predicated region
    $region14: #{tpu_custom_call.1} parent=1 // pred_check
      _
    $region15: #{tpu_custom_call.1} parent=1 // pred_check_branch
      %599 = sbr.rel (0) target = $region17
    $region16: #{tpu_custom_call.1} parent=1 // pred_region
      _
    $region17: #{tpu_custom_call.1} parent=1 // pred_fallthru
      _
    // Predicated region
    $region18: #{tpu_custom_call.1} parent=1 // pred_check
      _
    $region19: #{tpu_custom_call.1} parent=1 // pred_check_branch
      %601 = sbr.rel (0) target = $region21
    $region20: #{tpu_custom_call.1} parent=1 // pred_region
      _
    $region21: #{tpu_custom_call.1} parent=1 // pred_fallthru
      _
    // Predicated region
    $region22: #{tpu_custom_call.1} parent=1 // pred_check
      _
    $region23: #{tpu_custom_call.1} parent=1 // pred_check_branch
      %603 = sbr.rel (0) target = $region25
    $region24: #{tpu_custom_call.1} parent=1 // pred_region
      %s605 = ssub.s32 16, 16
      %606 = vsyncadd [#allocation3], %s605
      %s608 = sshll.u32 [#allocation2], 4
      %s609 = int_to_ptr.vmem [resolvable:$true] %s608
      %611 = dma.vmem_to_hbm [thread:$0]  %s609, 16, %s5, [#allocation3]
    $region25: #{tpu_custom_call.1} parent=1 // pred_fallthru
      _
    // Predicated region
    $region26: #{tpu_custom_call.1} parent=1 // pred_check
      _
    $region27: #{tpu_custom_call.1} parent=1 // pred_check_branch
      %613 = sbr.rel (0) target = $region29
    $region28: #{tpu_custom_call.1} parent=1 // pred_region
      %s615 = ssub.s32 16, 16
      %616 = vsyncadd [#allocation5], %s615
      %s618 = sshll.u32 [#allocation4], 4
      %s619 = int_to_ptr.vmem [resolvable:$true] %s618
      %621 = dma.vmem_to_hbm [thread:$0]  %s619, 16, %s6, [#allocation5]
    $region29: #{tpu_custom_call.1} parent=1 // pred_fallthru
      _
    // Predicated region
    $region30: #{tpu_custom_call.1} parent=1 // pred_check
      _
    $region31: #{tpu_custom_call.1} parent=1 // pred_check_branch
      %623 = sbr.rel (0) target = $region33
    $region32: #{tpu_custom_call.1} parent=1 // pred_region
      _
    $region33: #{tpu_custom_call.1} parent=1 // pred_fallthru
      _
    // Predicated region
    $region34: #{tpu_custom_call.1} parent=1 // pred_check
      _
    $region35: #{tpu_custom_call.1} parent=1 // pred_check_branch
      %625 = sbr.rel (0) target = $region37
    $region36: #{tpu_custom_call.1} parent=1 // pred_region
      _
    $region37: #{tpu_custom_call.1} parent=1 // pred_fallthru
      _
    // Predicated region
    $region38: #{tpu_custom_call.1} parent=1 // pred_check
      _
    $region39: #{tpu_custom_call.1} parent=1 // pred_check_branch
      %627 = sbr.rel (0) target = $region41
    $region40: #{tpu_custom_call.1} parent=1 // pred_region
      %628 = dma.done [#allocation3], 16
    $region41: #{tpu_custom_call.1} parent=1 // pred_fallthru
      _
    // Predicated region
    $region42: #{tpu_custom_call.1} parent=1 // pred_check
      _
    $region43: #{tpu_custom_call.1} parent=1 // pred_check_branch
      %630 = sbr.rel (0) target = $region45
    $region44: #{tpu_custom_call.1} parent=1 // pred_region
      %631 = dma.done [#allocation5], 16
    $region45: #{tpu_custom_call.1} parent=1 // pred_fallthru
      _
    %632 = vsyncpa [#allocation3], 1
    %633 = vsyncpa [#allocation5], 1

</llo_original>
